<compile_context>
chip_gen: v6e
topology: v6e:2x2x1
jax: 0.10.0
libtpu: 0.0.40
codegen_flags: <defaults>
</compile_context>

<pallas_src>
import jax
import jax.numpy as jnp
from jax.experimental import pallas as pl
from jax.experimental.pallas import tpu as pltpu


def _prompt_kernel(ctxdmx_ref, emb_ref, naive_hbm, out_ref):
    """Assemble one (class-block, domain-or-naive) tile of the prompt tensor.

    ctxdmx_ref: (1, n_ctx+n_dmx, D)  learned [ctx | dmx] tokens for this domain (VMEM)
    emb_ref:    (1, CB, L, D)        frozen learned-prompt token embeddings (VMEM)
    naive_hbm:  (n_cls_pad, L, D)    frozen naive-prompt embeddings (HBM, manual DMA)
    out_ref:    (1, CB, L, D)
    """
    c = pl.program_id(0)
    dm = pl.program_id(1)
    is_naive = dm == pl.num_programs(1) - 1
    cb = out_ref.shape[1]
    n_tok = ctxdmx_ref.shape[1]
    d = out_ref.shape[3]

    @pl.when(jnp.logical_not(is_naive))
    def _():
        # One aligned full-block copy (prefix + placeholder tokens + suffix) ...
        out_ref[...] = emb_ref[...]
        # ... then a SINGLE overwrite of the learned-token window [1, 1+n_tok).
        tok = ctxdmx_ref[0]                                     # (n_tok, D)
        out_ref[0, :, 1:1 + n_tok, :] = jnp.broadcast_to(tok[None], (cb, n_tok, d))

    @pl.when(is_naive)
    def _():
        # Naive rows are a pure copy: DMA HBM -> this output block's VMEM directly,
        # avoiding a third double-buffered input slab for data used on only
        # 1 of (n_dm + 1) steps.
        pltpu.sync_copy(naive_hbm.at[pl.ds(c * cb, cb)], out_ref.at[0])


def _class_block_cap(seq_len, ctx_dim, itemsize, vmem_cap):
    """Max classes per block so the double-buffered emb + out slabs fit VMEM."""
    pack = max(1, 4 // itemsize)                        # sublane packing (bf16: 2)
    l_pad = pl.cdiv(seq_len, 8 * pack) * (8 * pack)     # padded 2nd-minor dim (77 -> 80)
    d_pad = pl.cdiv(ctx_dim, 128) * 128                 # padded lane dim
    per_class = l_pad * d_pad * itemsize
    # ~25% headroom plus slack for the tiny ctxdmx buffers / internal scratch.
    budget = int(vmem_cap * 0.72) - (2 << 20)
    # 2 large blocked streams (frozen embedding in, prompts out) x 2 buffers each.
    return max(1, budget // (4 * per_class))


def _pick_class_block(n_cls, cap):
    """Return (class_block, padded_class_count).

    Prefer the largest divisor of n_cls within the VMEM-derived cap (no padding,
    no extra traffic).  Only when the best divisor collapses (prime / awkward
    class counts) pad the class axis up to a multiple of a near-cap block.
    """
    cap = max(1, min(cap, n_cls))
    best = 1
    for cand in range(1, cap + 1):
        if n_cls % cand == 0:
            best = cand
    if best * 2 >= cap:
        return best, n_cls
    cb = cap
    return cb, pl.cdiv(n_cls, cb) * cb


def prompt_learner_forward(ctx, domain_vectors, embedding, naive_embedding):
    """JAX/Pallas equivalent of PromptLearner.forward() (non-CSC, ctx.dim()==2).

    ctx:             (n_ctx, D)           learned shared context
    domain_vectors:  (n_dm, n_dmx, D)     learned per-domain context
    embedding:       (n_dm*n_cls, L, D)   frozen token embeddings of the learned
                                          prompts (prefix == [:, :1], suffix ==
                                          [:, 1+n:]; placeholder tokens in between
                                          are overwritten with ctx/dmx, matching
                                          torch.cat([prefix, ctxdmx, suffix], 1)).
    naive_embedding: (n_cls, L, D)        frozen "a photo of a <cls>." embeddings
    returns:         (n_dm*n_cls + n_cls, L, D)
    """
    n_ctx, ctx_dim = ctx.shape
    n_dm, n_dmx, _ = domain_vectors.shape
    n_prompts, seq_len, _ = embedding.shape
    n_cls = n_prompts // n_dm
    assert n_prompts == n_dm * n_cls
    assert naive_embedding.shape == (n_cls, seq_len, ctx_dim)
    n_tok = n_ctx + n_dmx
    assert 1 + n_tok <= seq_len

    out_dtype = embedding.dtype
    itemsize = jnp.dtype(out_dtype).itemsize

    # Pre-fuse the learned context in the wrapper: one tiny (n_dm, n_tok, D)
    # input, one store in the kernel, no per-step astype.
    ctxdmx = jnp.concatenate(
        [jnp.broadcast_to(ctx[None], (n_dm, n_ctx, ctx_dim)), domain_vectors],
        axis=1).astype(out_dtype)

    # Class-block sizing from the actual chip's VMEM (~25% headroom).
    try:
        vmem_cap = int(pltpu.get_tpu_info().vmem_capacity_bytes)
    except Exception:  # interpret mode / unexpected API surface -> conservative
        vmem_cap = 64 * 1024 * 1024
    cap = _class_block_cap(seq_len, ctx_dim, itemsize, vmem_cap)
    cb, n_cls_pad = _pick_class_block(n_cls, cap)
    n_cb = n_cls_pad // cb

    # Metadata-only reshape so blocks index (domain, class).
    emb4 = embedding.reshape(n_dm, n_cls, seq_len, ctx_dim)
    naive = naive_embedding.astype(out_dtype)
    if n_cls_pad != n_cls:
        # Awkward class count: pad the class axis so lane-dense near-cap blocks
        # survive (beats collapsing to tiny tiles); sliced off below.
        pad = n_cls_pad - n_cls
        emb4 = jnp.pad(emb4, ((0, 0), (0, pad), (0, 0), (0, 0)))
        naive = jnp.pad(naive, ((0, pad), (0, 0), (0, 0)))

    out_bytes = (n_dm + 1) * n_cls * seq_len * ctx_dim * itemsize
    vmem_limit = int(min(vmem_cap * 0.94, 127 * 2**20))

    out4 = pl.pallas_call(
        _prompt_kernel,
        out_shape=jax.ShapeDtypeStruct((n_dm + 1, n_cls_pad, seq_len, ctx_dim),
                                       out_dtype),
        grid_spec=pltpu.PrefetchScalarGridSpec(
            num_scalar_prefetch=0,
            grid=(n_cb, n_dm + 1),          # class blocks OUTER, domains INNER
            in_specs=[
                # fused ctx|dmx tokens: clamped on the naive step -> same block
                # index as the previous step, Pallas skips the re-DMA.
                pl.BlockSpec((1, n_tok, ctx_dim),
                             lambda c, m: (jnp.minimum(m, n_dm - 1), 0, 0)),
                # frozen learned-prompt embeddings, CB classes per block; clamped
                # on the naive step so no redundant fetch happens there.
                pl.BlockSpec((1, cb, seq_len, ctx_dim),
                             lambda c, m: (jnp.minimum(m, n_dm - 1), c, 0, 0)),
                # naive embeddings stay in HBM; copied manually on the naive step
                # only, so they never occupy a double-buffered VMEM slab.
                pl.BlockSpec(memory_space=pl.ANY),
            ],
            out_specs=pl.BlockSpec((1, cb, seq_len, ctx_dim),
                                   lambda c, m: (m, c, 0, 0)),
        ),
        compiler_params=pltpu.CompilerParams(
            dimension_semantics=("parallel", "parallel"),
            vmem_limit_bytes=vmem_limit),
        cost_estimate=pl.CostEstimate(flops=0, transcendentals=0,
                                      bytes_accessed=2 * out_bytes),
    )(ctxdmx, emb4, naive)

    if n_cls_pad != n_cls:
        out4 = out4[:, :n_cls]
    # rows [0, n_dm*n_cls) = learned prompts (dm-major, class-minor),
    # rows [n_dm*n_cls, ...) = naive prompts  -> matches torch.cat order.
    return out4.reshape((n_dm + 1) * n_cls, seq_len, ctx_dim)


def _reference_forward(ctx, domain_vectors, token_prefix, token_suffix,
                       naive_embedding):
    """Pure-JAX reference mirroring the PyTorch forward (non-CSC, ctx.dim()==2)."""
    n_ctx, ctx_dim = ctx.shape
    n_dm, n_dmx, _ = domain_vectors.shape
    n_cls = naive_embedding.shape[0]
    ctx_e = jnp.broadcast_to(ctx[None, None], (n_dm, n_cls, n_ctx, ctx_dim))
    dmx_e = jnp.broadcast_to(domain_vectors[:, None],
                             (n_dm, n_cls, n_dmx, ctx_dim))
    ctxdmx = jnp.concatenate([ctx_e, dmx_e], axis=2).reshape(
        n_dm * n_cls, n_ctx + n_dmx, ctx_dim)
    prompts = jnp.concatenate([token_prefix, ctxdmx, token_suffix], axis=1)
    return jnp.concatenate([prompts, naive_embedding], axis=0)


if __name__ == "__main__":
    # Small synthetic configuration consistent with PromptLearner.__init__:
    # TODO(synk): tokenization + clip_model.token_embedding happen in __init__,
    # not forward; here the frozen embeddings are synthetic stand-ins.
    n_cls = 8          # len(classnames)
    n_dm = 2           # source + target domains
    n_ctx = 4          # cfg.TRAINER.DAPL.N_CTX
    n_dmx = 4          # cfg.TRAINER.DAPL.N_DMX
    ctx_dim = 128      # lane-dense (multiple of 128); real CLIP uses 512
    seq_len = 16       # CLIP context length (77 in real CLIP)
    n = n_ctx + n_dmx
    dtype = jnp.bfloat16   # CLIP-native half precision: halves HBM traffic

    key = jax.random.PRNGKey(0)
    k_ctx, k_dmx, k_emb, k_neb = jax.random.split(key, 4)

    # nn.init.normal_(..., std=0.02) for the learned parameters.
    ctx = (0.02 * jax.random.normal(k_ctx, (n_ctx, ctx_dim))).astype(dtype)
    domain_vectors = (0.02 * jax.random.normal(
        k_dmx, (n_dm, n_dmx, ctx_dim))).astype(dtype)

    # Frozen token embeddings (stand-ins for clip_model.token_embedding output).
    embedding = jax.random.normal(
        k_emb, (n_dm * n_cls, seq_len, ctx_dim)).astype(dtype)
    naive_embedding = jax.random.normal(
        k_neb, (n_cls, seq_len, ctx_dim)).astype(dtype)

    out = prompt_learner_forward(ctx, domain_vectors, embedding, naive_embedding)
    out = jax.block_until_ready(out)

    # Reference uses the prefix/suffix slices exactly like the PyTorch module.
    token_prefix = embedding[:, :1, :]              # (n_dm*n_cls, 1, D)
    token_suffix = embedding[:, 1 + n:, :]          # (n_dm*n_cls, S, D)
    ref = _reference_forward(ctx, domain_vectors, token_prefix, token_suffix,
                             naive_embedding)

    assert out.shape == ((n_dm + 1) * n_cls, seq_len, ctx_dim), out.shape
    assert jnp.array_equal(out, ref), "Pallas output mismatch vs JAX reference"

    print("KERNEL_OK")
</pallas_src>

<mosaic_0001>
module attributes {stable_mosaic.version = 11 : i64} {
  func.func @_prompt_kernel(%arg0: i32, %arg1: i32, %arg2: memref<1x8x128xbf16, #tpu.memory_space<vmem>>, %arg3: memref<1x8x16x128xbf16, #tpu.memory_space<vmem>>, %arg4: memref<8x16x128xbf16, #tpu.memory_space<any>>, %arg5: memref<1x8x16x128xbf16, #tpu.memory_space<vmem>>) attributes {dimension_semantics = [#tpu.dimension_semantics<parallel>, #tpu.dimension_semantics<parallel>], iteration_bounds = array<i64: 1, 3>, scalar_prefetch = 0 : i64, scratch_operands = 0 : i64, tpu.core_type = #tpu.core_type<tc>, window_params = [{transform_indices = @transform_0, window_bounds = array<i64: 1, 8, 128>}, {transform_indices = @transform_1, window_bounds = array<i64: 1, 8, 16, 128>}, {}, {transform_indices = @transform_3, window_bounds = array<i64: 1, 8, 16, 128>}]} {
    %c2_i32 = arith.constant 2 : i32
    %0 = arith.cmpi eq, %arg1, %c2_i32 : i32
    %true = arith.constant true
    %1 = arith.xori %0, %true : i1
    %2 = arith.extui %1 : i1 to i32
    %c0_i32 = arith.constant 0 : i32
    %3 = arith.cmpi ne, %2, %c0_i32 : i32
    scf.if %3 {
      %c0 = arith.constant 0 : index
      %c0_1 = arith.constant 0 : index
      %c0_2 = arith.constant 0 : index
      %c0_3 = arith.constant 0 : index
      %6 = vector.load %arg3[%c0, %c0_1, %c0_2, %c0_3] : memref<1x8x16x128xbf16, #tpu.memory_space<vmem>>, vector<1x8x16x128xbf16>
      %c0_4 = arith.constant 0 : index
      %c0_5 = arith.constant 0 : index
      %c0_6 = arith.constant 0 : index
      %c0_7 = arith.constant 0 : index
      %7 = vector.load %arg5[%c0_4, %c0_5, %c0_6, %c0_7] : memref<1x8x16x128xbf16, #tpu.memory_space<vmem>>, vector<1x8x16x128xbf16>
      tpu.vector_store %arg5[%c0_4, %c0_5, %c0_6, %c0_7], %6 {strides = array<i32>} : memref<1x8x16x128xbf16, #tpu.memory_space<vmem>>, vector<1x8x16x128xbf16>,
      %c0_8 = arith.constant 0 : index
      %c0_9 = arith.constant 0 : index
      %c0_10 = arith.constant 0 : index
      %8 = vector.load %arg2[%c0_8, %c0_9, %c0_10] : memref<1x8x128xbf16, #tpu.memory_space<vmem>>, vector<1x8x128xbf16>
      %9 = vector.shape_cast %8 : vector<1x8x128xbf16> to vector<8x128xbf16>
      %10 = vector.shape_cast %9 : vector<8x128xbf16> to vector<1x8x128xbf16>
      %11 = vector.shape_cast %10 : vector<1x8x128xbf16> to vector<1x8x128xbf16>
      %12 = vector.broadcast %11 : vector<1x8x128xbf16> to vector<8x8x128xbf16>
      %c0_11 = arith.constant 0 : index
      %c0_12 = arith.constant 0 : index
      %c1 = arith.constant 1 : index
      %c0_13 = arith.constant 0 : index
      %13 = vector.load %arg5[%c0_11, %c0_12, %c1, %c0_13] : memref<1x8x16x128xbf16, #tpu.memory_space<vmem>>, vector<1x8x8x128xbf16>
      %14 = vector.shape_cast %13 : vector<1x8x8x128xbf16> to vector<8x8x128xbf16>
      %15 = vector.shape_cast %12 : vector<8x8x128xbf16> to vector<1x8x8x128xbf16>
      tpu.vector_store %arg5[%c0_11, %c0_12, %c1, %c0_13], %15 {strides = array<i32>} : memref<1x8x16x128xbf16, #tpu.memory_space<vmem>>, vector<1x8x8x128xbf16>,
    } else {
    }
    %4 = arith.extui %0 : i1 to i32
    %c0_i32_0 = arith.constant 0 : i32
    %5 = arith.cmpi ne, %4, %c0_i32_0 : i32
    scf.if %5 {
      %c8_i32 = arith.constant 8 : i32
      %6 = arith.muli %arg0, %c8_i32 : i32
      %c0_i32_1 = arith.constant 0 : i32
      "tpu.region"() ({
        %7 = tpu.sem_alloc : memref<!tpu.dma_semaphore, #tpu.memory_space<semaphore_mem>>
        %c0_i32_2 = arith.constant 0 : i32
        %c0_i32_3 = arith.constant 0 : i32
        %8 = tpu.memref_slice %arg4[%6, %c0_i32_2, %c0_i32_3] : memref<8x16x128xbf16, #tpu.memory_space<any>> -> memref<8x16x128xbf16, #tpu.memory_space<any>>
        %c0_i32_4 = arith.constant 0 : i32
        %c0_i32_5 = arith.constant 0 : i32
        %c0_i32_6 = arith.constant 0 : i32
        %9 = tpu.memref_slice %arg5[%c0_i32_1, %c0_i32_4, %c0_i32_5, %c0_i32_6] : memref<1x8x16x128xbf16, #tpu.memory_space<vmem>> -> memref<1x8x16x128xbf16, #tpu.memory_space<vmem>>
        %10 = tpu.memref_squeeze %9 : memref<1x8x16x128xbf16, #tpu.memory_space<vmem>> -> memref<8x16x128xbf16, #tpu.memory_space<vmem>>
        tpu.enqueue_dma source(%8 : memref<8x16x128xbf16, #tpu.memory_space<any>>) target(%10 : memref<8x16x128xbf16, #tpu.memory_space<vmem>>) target_semaphore(%7 : memref<!tpu.dma_semaphore, #tpu.memory_space<semaphore_mem>>)
        %c0_i32_7 = arith.constant 0 : i32
        %c0_i32_8 = arith.constant 0 : i32
        %11 = tpu.memref_slice %arg4[%6, %c0_i32_7, %c0_i32_8] : memref<8x16x128xbf16, #tpu.memory_space<any>> -> memref<8x16x128xbf16, #tpu.memory_space<any>>
        %c0_i32_9 = arith.constant 0 : i32
        %c0_i32_10 = arith.constant 0 : i32
        %c0_i32_11 = arith.constant 0 : i32
        %12 = tpu.memref_slice %arg5[%c0_i32_1, %c0_i32_9, %c0_i32_10, %c0_i32_11] : memref<1x8x16x128xbf16, #tpu.memory_space<vmem>> -> memref<1x8x16x128xbf16, #tpu.memory_space<vmem>>
        %13 = tpu.memref_squeeze %12 : memref<1x8x16x128xbf16, #tpu.memory_space<vmem>> -> memref<8x16x128xbf16, #tpu.memory_space<vmem>>
        tpu.wait_dma2 semaphore(%7 : memref<!tpu.dma_semaphore, #tpu.memory_space<semaphore_mem>>) src(%11 : memref<8x16x128xbf16, #tpu.memory_space<any>>) dst(%13 : memref<8x16x128xbf16, #tpu.memory_space<vmem>>)
        tpu.yield
      }) : () -> ()
    } else {
    }
    return
  }
  func.func @transform_0(%arg0: i32, %arg1: i32) -> (i32, i32, i32) {
    %c1_i32 = arith.constant 1 : i32
    %0 = arith.minsi %arg1, %c1_i32 : i32
    %c0_i32 = arith.constant 0 : i32
    %c0_i32_0 = arith.constant 0 : i32
    %c0_i32_1 = arith.constant 0 : i32
    return %0, %c0_i32, %c0_i32_0 : i32, i32, i32
  }
  func.func @transform_1(%arg0: i32, %arg1: i32) -> (i32, i32, i32, i32) {
    %c1_i32 = arith.constant 1 : i32
    %0 = arith.minsi %arg1, %c1_i32 : i32
    %c0_i32 = arith.constant 0 : i32
    %c0_i32_0 = arith.constant 0 : i32
    %c0_i32_1 = arith.constant 0 : i32
    return %0, %arg0, %c0_i32, %c0_i32_0 : i32, i32, i32, i32
  }
  func.func @transform_3(%arg0: i32, %arg1: i32) -> (i32, i32, i32, i32) {
    %c0_i32 = arith.constant 0 : i32
    %c0_i32_0 = arith.constant 0 : i32
    %c0_i32_1 = arith.constant 0 : i32
    return %arg1, %arg0, %c0_i32, %c0_i32_0 : i32, i32, i32, i32
  }
}

</mosaic_0001>

<llo_original>
// kernel: tpu_custom_call.1
$region0: #{tpu_custom_call.1}
  #allocation0 [shape = 'u32[]', space=smem, size = 0x4, offset = 0x4, fixed_abs, tag = 'smem constant byte address 0x4 - core index']
  #allocation1 [shape = 'u32[144,128]{1,0:T(1,128)}', space=vmem, size = 0x12000, scoped, tag = 'internal scratch']
  #allocation9 [shape = 's32[]', space=sflag, size = 0x4, offset = 0, fixed_abs, tag = 'sflag constant byte address 0x0 - dummy sync flag']
  #allocation10 [shape = 's32[]', space=sflag, size = 0x4, offset = 0, fixed_abs, tag = 'sflag constant byte address 0x0 - dummy sync flag']
  #allocation11 [shape = 'u32[]', space=smem, size = 0x4, offset = 0x44, fixed_abs, tag = 'smem constant byte address 0x44 - assertion arg 0']
  #allocation12 [shape = 'u32[]', space=smem, size = 0x4, offset = 0x48, fixed_abs, tag = 'smem constant byte address 0x48 - assertion arg 1']
  %s0 = inlined_call_operand.hbm [shape: bf16[2,8,128], index: 0, kind: input, shape index: {}]
  %s1 = inlined_call_operand.hbm [shape: bf16[2,8,16,128], index: 1, kind: input, shape index: {}]
  %s2 = inlined_call_operand.hbm [shape: bf16[8,16,128], index: 2, kind: input, shape index: {}]
  %s3 = inlined_call_operand.hbm [shape: bf16[3,8,16,128], index: 3, kind: output, shape index: {}]
  %s4 = sld [smem:[#allocation0]]
  $region62: #{tpu_custom_call.1} parent=0
    _
  %s6 = ssub.s32 1, %s4
  %s7 = scalar_select 0, %s6, %s4
  $region1: #{tpu_custom_call.1} parent=0
    #allocation2 [shape = 'u8[4096]{0}', space=vmem, size = 0x1000, scoped, tag = 'input window, operand 0']
    #allocation3 [shape = 's32[2]{0}', space=sflag, size = 0x8, scoped, tag = 'scoped memory for tpu_custom_call.1']
    #allocation4 [shape = 's32[2]{0}', space=sflag, size = 0x8, scoped, tag = 'scoped memory for tpu_custom_call.1']
    #allocation5 [shape = 'u8[65536]{0}', space=vmem, size = 0x10000, scoped, tag = 'input window, operand 1']
    #allocation6 [shape = 's32[2]{0}', space=sflag, size = 0x8, scoped, tag = 'scoped memory for tpu_custom_call.1']
    #allocation7 [shape = 'u8[65536]{0}', space=vmem, size = 0x10000, scoped, tag = 'output window, operand 0']
    %8 = vsyncpa [#allocation3], 0
    %s9 = scalar_lea.sflag [#allocation3], 1
    %10 = vsyncpa %s9, 0
    %11 = vsyncpa [#allocation6], 0
    %s12 = scalar_lea.sflag [#allocation6], 1
    %13 = vsyncpa %s12, 0
    %14 = vsyncpa [#allocation4], 0
    %s15 = scalar_lea.sflag [#allocation4], 1
    %16 = vsyncpa %s15, 0
    loop: start=0, step=1, limit=5
    $region2: #{tpu_custom_call.1} parent=1 // loop_pre_header
      _
    $region3: #{tpu_custom_call.1} parent=1 // loop_header
      %s18 = sphi 0, %s22
      %p19 = scmp.ge.s32.totalorder %s18, 5
      %s25 = sphi 0, %s37
      %s26 = sphi 0, %s33
      %s27 = sphi 0, %s25
      %s28 = sphi 0, %s26
      %s29 = sphi 0, %s27
      %s30 = sphi 0, %s28
      %s44 = sphi 0, %s46
      %s47 = sphi 0, %s44
      %s48 = sphi 0, %s47
      %s64 = sphi 0, %s48
      %s76 = sphi 0, %s78
      %s79 = sphi 0, %s76
      %s80 = sphi 0, %s79
      %s96 = sphi 0, %s80
      %s104 = sphi 0, %s106
      %s107 = sphi 0, %s104
      %s108 = sphi 0, %s107
      %s124 = sphi 0, %s108
    $region4: #{tpu_custom_call.1} parent=1 // loop_header_branch
      %21 = sbr.rel (%p19) target = $region8
    $region5: #{tpu_custom_call.1} parent=1 // loop_body
      %s23 = ssub.s32 %s18, 1
      %s24 = ssub.s32 %s18, 2
      %s31 = sadd.s32 1, %s26
      %p32 = scmp.ge.s32.totalorder %s31, 3
      %s33 = scalar_select %p32, 0, %s31
      %s34 = sadd.s32 1, %s25
      %s35 = scalar_select %p32, %s34, %s25
      %p36 = scmp.ge.s32.totalorder %s35, 1
      %s37 = scalar_select %p36, 0, %s35
      %p38 = scmp.lt.s32.totalorder %s26, 1
      %s39 = scalar_select %p38, %s26, 1
      %p40 = scmp.lt.s32.totalorder %s33, 1
      %s41 = scalar_select %p40, %s33, 1
      %s42 = ssub.s32 %s39, %s41
      %p43 = scmp.eq.s32.totalorder %s42, 0
      %s45 = sadd.s32 %s44, 1
      %s46 = scalar_select %p43, %s44, %s45
      %p49 = pneg %p43
      %p50 = scmp.eq.s32.totalorder %s18, 2
      %p51 = por %p49, %p50
      %p52 = scmp.ne.s32.totalorder %s44, %s47
      %p53 = scmp.eq.s32.totalorder %s18, 0
      %p54 = por %p52, %p53
      %p55 = scmp.ne.s32.totalorder %s44, %s47
      %p56 = scmp.eq.s32.totalorder %s23, 2
      %p57 = por %p55, %p56
      %p58 = scmp.ne.s32.totalorder %s47, %s48
      %p59 = scmp.eq.s32.totalorder %s23, 0
      %p60 = por %p58, %p59
      %p61 = scmp.ne.s32.totalorder %s47, %s48
      %p62 = scmp.eq.s32.totalorder %s24, 2
      %p63 = por %p61, %p62
      %p65 = scmp.ne.s32.totalorder %s48, %s64
      %p66 = scmp.eq.s32.totalorder %s24, 0
      %p67 = por %p65, %p66
      %p68 = scmp.lt.s32.totalorder %s26, 1
      %s69 = scalar_select %p68, %s26, 1
      %p70 = scmp.lt.s32.totalorder %s33, 1
      %s71 = scalar_select %p70, %s33, 1
      %s72 = ssub.s32 %s69, %s71
      %s73 = ssub.s32 %s25, %s37
      %s74 = sor.u32 %s72, %s73
      %p75 = scmp.eq.s32.totalorder %s74, 0
      %s77 = sadd.s32 %s76, 1
      %s78 = scalar_select %p75, %s76, %s77
      %p81 = pneg %p75
      %p82 = scmp.eq.s32.totalorder %s18, 2
      %p83 = por %p81, %p82
      %p84 = scmp.ne.s32.totalorder %s76, %s79
      %p85 = scmp.eq.s32.totalorder %s18, 0
      %p86 = por %p84, %p85
      %p87 = scmp.ne.s32.totalorder %s76, %s79
      %p88 = scmp.eq.s32.totalorder %s23, 2
      %p89 = por %p87, %p88
      %p90 = scmp.ne.s32.totalorder %s79, %s80
      %p91 = scmp.eq.s32.totalorder %s23, 0
      %p92 = por %p90, %p91
      %p93 = scmp.ne.s32.totalorder %s79, %s80
      %p94 = scmp.eq.s32.totalorder %s24, 2
      %p95 = por %p93, %p94
      %p97 = scmp.ne.s32.totalorder %s80, %s96
      %p98 = scmp.eq.s32.totalorder %s24, 0
      %p99 = por %p97, %p98
      %s100 = ssub.s32 %s26, %s33
      %s101 = ssub.s32 %s25, %s37
      %s102 = sor.u32 %s100, %s101
      %p103 = scmp.eq.s32.totalorder %s102, 0
      %s105 = sadd.s32 %s104, 1
      %s106 = scalar_select %p103, %s104, %s105
      %p109 = pneg %p103
      %p110 = scmp.eq.s32.totalorder %s18, 2
      %p111 = por %p109, %p110
      %p112 = scmp.ne.s32.totalorder %s104, %s107
      %p113 = scmp.eq.s32.totalorder %s18, 0
      %p114 = por %p112, %p113
      %p115 = scmp.ne.s32.totalorder %s104, %s107
      %p116 = scmp.eq.s32.totalorder %s23, 2
      %p117 = por %p115, %p116
      %p118 = scmp.ne.s32.totalorder %s107, %s108
      %p119 = scmp.eq.s32.totalorder %s23, 0
      %p120 = por %p118, %p119
      %p121 = scmp.ne.s32.totalorder %s107, %s108
      %p122 = scmp.eq.s32.totalorder %s24, 2
      %p123 = por %p121, %p122
      %p125 = scmp.ne.s32.totalorder %s108, %s124
      %p126 = scmp.eq.s32.totalorder %s24, 0
      %p127 = por %p125, %p126
      %p128 = scmp.le.s32.totalorder 1, %s18
      %p129 = scmp.lt.s32.totalorder %s18, 4
      %p130 = pnand %p128, %p129
      %p131 = pneg %p130
      // Predicated region
      $region9: #{tpu_custom_call.1} parent=5 // pred_check
        _
      $region10: #{tpu_custom_call.1} parent=5 // pred_check_branch
        %133 = sbr.rel (%p130) target = $region12
      $region11: #{tpu_custom_call.1} parent=5 // pred_region
        %s134 = ssub.s32 %s18, 1
      $region12: #{tpu_custom_call.1} parent=5 // pred_fallthru
        _
      %p135 = scmp.lt.s32.totalorder %s18, 3
      // Predicated region
      $region13: #{tpu_custom_call.1} parent=5 // pred_check
        %p136 = pneg %p135
      $region14: #{tpu_custom_call.1} parent=5 // pred_check_branch
        %138 = sbr.rel (%p136) target = $region16
      $region15: #{tpu_custom_call.1} parent=5 // pred_region
        // Predicated region
        $region17: #{tpu_custom_call.1} parent=15 // pred_check
          %p139 = pneg %p54
        $region18: #{tpu_custom_call.1} parent=15 // pred_check_branch
          %141 = sbr.rel (%p139) target = $region20
        $region19: #{tpu_custom_call.1} parent=15 // pred_region
          %s142 = sand.u32 %s44, 1
          %s143 = scalar_lea.sflag [#allocation3], %s142
          %s144 = sand.u32 %s44, 1
          %s145 = smul.addr %s144, 4
          %s146 = scalar_lea.vmem [#allocation2], %s145
          %p147 = scmp.lt.s32.totalorder %s26, 1
          %s148 = scalar_select %p147, %s26, 1
          %s150 = ssub.s32 64, 64
          %151 = vsyncadd %s143, %s150
          %s152 = smul.addr %s148, 64
          %s153 = scalar_lea.hbm %s0, %s152
          %s155 = sshll.u32 %s146, 4
          %s156 = int_to_ptr.vmem [resolvable:$true] %s155
          %158 = dma.hbm_to_vmem [thread:$0]  %s153, 64, %s156, %s143
        $region20: #{tpu_custom_call.1} parent=15 // pred_fallthru
          _
        // Predicated region
        $region21: #{tpu_custom_call.1} parent=15 // pred_check
          %p159 = pneg %p86
        $region22: #{tpu_custom_call.1} parent=15 // pred_check_branch
          %161 = sbr.rel (%p159) target = $region24
        $region23: #{tpu_custom_call.1} parent=15 // pred_region
          %s162 = sand.u32 %s76, 1
          %s163 = scalar_lea.sflag [#allocation6], %s162
          %s164 = sand.u32 %s76, 1
          %s165 = smul.addr %s164, 64
          %s166 = scalar_lea.vmem [#allocation5], %s165
          %p167 = scmp.lt.s32.totalorder %s26, 1
          %s168 = scalar_select %p167, %s26, 1
          %s169 = smul.u32 8, %s25
          %s171 = ssub.s32 1024, 1024
          %172 = vsyncadd %s163, %s171
          %s173 = smul.addr %s169, 2
          %s174 = smul.addr %s168, 16
          %s175 = sadd.s32 %s173, %s174
          %s176 = smul.addr %s175, 64
          %s177 = scalar_lea.hbm %s1, %s176
          %s178 = sshll.u32 %s166, 4
          %s179 = int_to_ptr.vmem [resolvable:$true] %s178
          %184 = dma.hbm_to_vmem [thread:$0]  %s177, 1024, %s179, %s163, 64, 64, 4
        $region24: #{tpu_custom_call.1} parent=15 // pred_fallthru
          _
      $region16: #{tpu_custom_call.1} parent=5 // pred_fallthru
        _
      %p185 = scmp.le.s32.totalorder 1, %s18
      %p186 = scmp.lt.s32.totalorder %s18, 4
      %p187 = pnand %p185, %p186
      %p188 = pneg %p187
      // Predicated region
      $region25: #{tpu_custom_call.1} parent=5 // pred_check
        _
      $region26: #{tpu_custom_call.1} parent=5 // pred_check_branch
        %190 = sbr.rel (%p187) target = $region28
      $region27: #{tpu_custom_call.1} parent=5 // pred_region
        %s191 = ssub.s32 %s18, 1
        %s192 = sand.u32 %s47, 1
        %s193 = scalar_lea.sflag [#allocation3], %s192
        %s194 = sand.u32 %s47, 1
        %s195 = smul.addr %s194, 4
        %s196 = scalar_lea.vmem [#allocation2], %s195
        // Predicated region
        $region29: #{tpu_custom_call.1} parent=27 // pred_check
          %p197 = pneg %p60
        $region30: #{tpu_custom_call.1} parent=27 // pred_check_branch
          %199 = sbr.rel (%p197) target = $region32
        $region31: #{tpu_custom_call.1} parent=27 // pred_region
          %200 = dma.done %s193, 64
        $region32: #{tpu_custom_call.1} parent=27 // pred_fallthru
          _
        %s201 = sand.u32 %s79, 1
        %s202 = scalar_lea.sflag [#allocation6], %s201
        %s203 = sand.u32 %s79, 1
        %s204 = smul.addr %s203, 64
        %s205 = scalar_lea.vmem [#allocation5], %s204
        // Predicated region
        $region33: #{tpu_custom_call.1} parent=27 // pred_check
          %p206 = pneg %p92
        $region34: #{tpu_custom_call.1} parent=27 // pred_check_branch
          %208 = sbr.rel (%p206) target = $region36
        $region35: #{tpu_custom_call.1} parent=27 // pred_region
          %209 = dma.done %s202, 1024
        $region36: #{tpu_custom_call.1} parent=27 // pred_fallthru
          _
        %s210 = sand.u32 %s47, 1
        %s211 = scalar_lea.sflag [#allocation3], %s210
        %s212 = sand.u32 %s47, 1
        %s213 = smul.addr %s212, 4
        %s214 = scalar_lea.vmem [#allocation2], %s213
        %p215 = pneg %p60
        %p216 = pneg %p57
        %s217 = sand.u32 %s79, 1
        %s218 = scalar_lea.sflag [#allocation6], %s217
        %s219 = sand.u32 %s79, 1
        %s220 = smul.addr %s219, 64
        %s221 = scalar_lea.vmem [#allocation5], %s220
        %p222 = pneg %p92
        %p223 = pneg %p89
        %p224 = pneg %p120
        %p225 = pneg %p117
        %s226 = sand.u32 %s107, 1
        %s227 = scalar_lea.sflag [#allocation4], %s226
        %s228 = sand.u32 %s107, 1
        %s229 = smul.addr %s228, 64
        %s230 = scalar_lea.vmem [#allocation7], %s229
        %p231 = scmp.lt.s32.totalorder %s28, 1
        %s232 = scalar_select %p231, %s28, 1
        %p233 = scmp.lt.s32.totalorder %s28, 1
        %s234 = scalar_select %p233, %s28, 1
        %s235 = smul.u32 8, %s27
        %s236 = smul.u32 8, %s27
        %p237 = scmp.eq.s32.totalorder %s28, 2
        %p238 = scmp.ne.s32.totalorder %s28, 2
        // Predicated region
        $region37: #{tpu_custom_call.1} parent=27 // pred_check
          %p239 = pneg %p238
        $region38: #{tpu_custom_call.1} parent=27 // pred_check_branch
          %241 = sbr.rel (%p239) target = $region40
        $region39: #{tpu_custom_call.1} parent=27 // pred_region
          %v242 = vld [vmem:[%s205] sm:$0xf]
          %v243 = vld [vmem:[%s205 + $0x4] sm:$0xf]
          %v244 = vld [vmem:[%s205 + $0x8] sm:$0xf]
          %v245 = vld [vmem:[%s205 + $0xc] sm:$0xf]
          %v246 = vld [vmem:[%s205 + $0x10] sm:$0xf]
          %v247 = vld [vmem:[%s205 + $0x14] sm:$0xf]
          %v248 = vld [vmem:[%s205 + $0x18] sm:$0xf]
          %v249 = vld [vmem:[%s205 + $0x1c] sm:$0xf]
          %v250 = vld [vmem:[%s205 + $0x20] sm:$0xf]
          %v251 = vld [vmem:[%s205 + $0x24] sm:$0xf]
          %v252 = vld [vmem:[%s205 + $0x28] sm:$0xf]
          %v253 = vld [vmem:[%s205 + $0x2c] sm:$0xf]
          %v254 = vld [vmem:[%s205 + $0x30] sm:$0xf]
          %v255 = vld [vmem:[%s205 + $0x34] sm:$0xf]
          %v256 = vld [vmem:[%s205 + $0x38] sm:$0xf]
          %v257 = vld [vmem:[%s205 + $0x3c] sm:$0xf]
          %258 = vst [vmem:[%s230] sm:$0xf] %v242
          %259 = vst [vmem:[%s230 + $0x4] sm:$0xf] %v243
          %260 = vst [vmem:[%s230 + $0x8] sm:$0xf] %v244
          %261 = vst [vmem:[%s230 + $0xc] sm:$0xf] %v245
          %262 = vst [vmem:[%s230 + $0x10] sm:$0xf] %v246
          %263 = vst [vmem:[%s230 + $0x14] sm:$0xf] %v247
          %264 = vst [vmem:[%s230 + $0x18] sm:$0xf] %v248
          %265 = vst [vmem:[%s230 + $0x1c] sm:$0xf] %v249
          %266 = vst [vmem:[%s230 + $0x20] sm:$0xf] %v250
          %267 = vst [vmem:[%s230 + $0x24] sm:$0xf] %v251
          %268 = vst [vmem:[%s230 + $0x28] sm:$0xf] %v252
          %269 = vst [vmem:[%s230 + $0x2c] sm:$0xf] %v253
          %270 = vst [vmem:[%s230 + $0x30] sm:$0xf] %v254
          %271 = vst [vmem:[%s230 + $0x34] sm:$0xf] %v255
          %272 = vst [vmem:[%s230 + $0x38] sm:$0xf] %v256
          %273 = vst [vmem:[%s230 + $0x3c] sm:$0xf] %v257
          %v274 = vld [vmem:[%s196] sm:$0xf]
          %v276 = vshrl.u32 %v274, 16
          %v278 = vrot.slane %v276, 7
          %v279 = vshll.u32 %v274, 16
          %v281 = vor.u32 %v278, %v279
          %v282 = vrot.slane %v278, 4
          %vm285 = vcmask 1043456
          %vm286 = vsmask.f32 7938
          %vm287 = vmand %vm285, %vm286
          %v288 = vld [vmem:[%s230] sm:$0xf]
          %v289 = vsel %vm287, %v281, %v288
          %290 = vst [vmem:[%s230] sm:$0xf] %v289
          %vm291 = vcmask 1040384
          %vm292 = vsmask.f32 256
          %vm293 = vmand %vm291, %vm292
          %v294 = vld [vmem:[%s230 + $0x4] sm:$0x1]
          %v295 = vsel %vm293, %v282, %v294
          %296 = vst [vmem:[%s230 + $0x4] sm:$0x1] %v295
          %v297 = vld [vmem:[%s230 + $0x8] sm:$0xf]
          %v298 = vsel %vm287, %v281, %v297
          %299 = vst [vmem:[%s230 + $0x8] sm:$0xf] %v298
          %v300 = vld [vmem:[%s230 + $0xc] sm:$0x1]
          %v301 = vsel %vm293, %v282, %v300
          %302 = vst [vmem:[%s230 + $0xc] sm:$0x1] %v301
          %v303 = vld [vmem:[%s230 + $0x10] sm:$0xf]
          %v304 = vsel %vm287, %v281, %v303
          %305 = vst [vmem:[%s230 + $0x10] sm:$0xf] %v304
          %v306 = vld [vmem:[%s230 + $0x14] sm:$0x1]
          %v307 = vsel %vm293, %v282, %v306
          %308 = vst [vmem:[%s230 + $0x14] sm:$0x1] %v307
          %v309 = vld [vmem:[%s230 + $0x18] sm:$0xf]
          %v310 = vsel %vm287, %v281, %v309
          %311 = vst [vmem:[%s230 + $0x18] sm:$0xf] %v310
          %v312 = vld [vmem:[%s230 + $0x1c] sm:$0x1]
          %v313 = vsel %vm293, %v282, %v312
          %314 = vst [vmem:[%s230 + $0x1c] sm:$0x1] %v313
          %v315 = vld [vmem:[%s230 + $0x20] sm:$0xf]
          %v316 = vsel %vm287, %v281, %v315
          %317 = vst [vmem:[%s230 + $0x20] sm:$0xf] %v316
          %v318 = vld [vmem:[%s230 + $0x24] sm:$0x1]
          %v319 = vsel %vm293, %v282, %v318
          %320 = vst [vmem:[%s230 + $0x24] sm:$0x1] %v319
          %v321 = vld [vmem:[%s230 + $0x28] sm:$0xf]
          %v322 = vsel %vm287, %v281, %v321
          %323 = vst [vmem:[%s230 + $0x28] sm:$0xf] %v322
          %v324 = vld [vmem:[%s230 + $0x2c] sm:$0x1]
          %v325 = vsel %vm293, %v282, %v324
          %326 = vst [vmem:[%s230 + $0x2c] sm:$0x1] %v325
          %v327 = vld [vmem:[%s230 + $0x30] sm:$0xf]
          %v328 = vsel %vm287, %v281, %v327
          %329 = vst [vmem:[%s230 + $0x30] sm:$0xf] %v328
          %v330 = vld [vmem:[%s230 + $0x34] sm:$0x1]
          %v331 = vsel %vm293, %v282, %v330
          %332 = vst [vmem:[%s230 + $0x34] sm:$0x1] %v331
          %v333 = vld [vmem:[%s230 + $0x38] sm:$0xf]
          %v334 = vsel %vm287, %v281, %v333
          %335 = vst [vmem:[%s230 + $0x38] sm:$0xf] %v334
          %v336 = vld [vmem:[%s230 + $0x3c] sm:$0x1]
          %v337 = vsel %vm293, %v282, %v336
          %338 = vst [vmem:[%s230 + $0x3c] sm:$0x1] %v337
        $region40: #{tpu_custom_call.1} parent=27 // pred_fallthru
          _
        // Predicated region
        $region41: #{tpu_custom_call.1} parent=27 // pred_check
          %p339 = pneg %p237
        $region42: #{tpu_custom_call.1} parent=27 // pred_check_branch
          %341 = sbr.rel (%p339) target = $region44
        $region43: #{tpu_custom_call.1} parent=27 // pred_region
          %s342 = smul.u32 %s27, 8
          $region45: #{tpu_custom_call.1} parent=43
            #allocation8 [shape = 's32[1]{0}', space=sflag, size = 0x4, scoped, tag = 'scoped memory for tpu_custom_call.1']
            %s343 = smul.u32 %s342, 2
            %s344 = smul.addr %s343, 64
            %s345 = scalar_lea.hbm %s2, %s344
            // Predicated region
            $region46: #{tpu_custom_call.1} parent=45 // pred_check
              _
            $region47: #{tpu_custom_call.1} parent=45 // pred_check_branch
              %347 = sbr.rel target = $region49
            $region48: #{tpu_custom_call.1} parent=45 // pred_region
              %348 = sst [smem:[#allocation11]] [#allocation10]
              %349 = sst [smem:[#allocation12]] [#allocation9]
            $region49: #{tpu_custom_call.1} parent=45 // pred_fallthru
              _
            %351 = shalt.err (0)
            %s353 = sshll.u32 %s230, 4
            %s354 = int_to_ptr.vmem [resolvable:$true] %s353
            %356 = dma.hbm_to_vmem [thread:$0]  %s345, 1024, %s354, [#allocation8]
            %s357 = smul.u32 4, 8
            %s358 = smul.u32 %s357, 2
            %s359 = smul.u32 %s358, 1
            %s360 = sshll.u32 %s359, 4
            %361 = dma.done [#allocation8], %s360
        $region44: #{tpu_custom_call.1} parent=27 // pred_fallthru
          _
        %s362 = sand.u32 %s107, 1
        %s363 = scalar_lea.sflag [#allocation4], %s362
        %s364 = sand.u32 %s107, 1
        %s365 = smul.addr %s364, 64
        %s366 = scalar_lea.vmem [#allocation7], %s365
        // Predicated region
        $region50: #{tpu_custom_call.1} parent=27 // pred_check
          %p367 = pneg %p117
        $region51: #{tpu_custom_call.1} parent=27 // pred_check_branch
          %369 = sbr.rel (%p367) target = $region53
        $region52: #{tpu_custom_call.1} parent=27 // pred_region
          %s370 = smul.u32 8, %s27
          %s372 = ssub.s32 1024, 1024
          %373 = vsyncadd %s363, %s372
          %s374 = smul.addr %s370, 2
          %s375 = smul.addr %s28, 16
          %s376 = sadd.s32 %s374, %s375
          %s377 = smul.addr %s376, 64
          %s378 = scalar_lea.hbm %s3, %s377
          %s379 = sshll.u32 %s366, 4
          %s380 = int_to_ptr.vmem [resolvable:$true] %s379
          %385 = dma.vmem_to_hbm [thread:$0]  %s380, 1024, %s378, %s363, 64, 64, 4
        $region53: #{tpu_custom_call.1} parent=27 // pred_fallthru
          _
      $region28: #{tpu_custom_call.1} parent=5 // pred_fallthru
        _
      %p386 = scmp.le.s32.totalorder 2, %s18
      // Predicated region
      $region54: #{tpu_custom_call.1} parent=5 // pred_check
        %p387 = pneg %p386
      $region55: #{tpu_custom_call.1} parent=5 // pred_check_branch
        %389 = sbr.rel (%p387) target = $region57
      $region56: #{tpu_custom_call.1} parent=5 // pred_region
        %s390 = ssub.s32 %s18, 2
        // Predicated region
        $region58: #{tpu_custom_call.1} parent=56 // pred_check
          %p391 = pneg %p123
        $region59: #{tpu_custom_call.1} parent=56 // pred_check_branch
          %393 = sbr.rel (%p391) target = $region61
        $region60: #{tpu_custom_call.1} parent=56 // pred_region
          %s394 = sand.u32 %s108, 1
          %s395 = scalar_lea.sflag [#allocation4], %s394
          %s396 = sand.u32 %s108, 1
          %s397 = smul.addr %s396, 64
          %s398 = scalar_lea.vmem [#allocation7], %s397
          %399 = dma.done %s395, 1024
        $region61: #{tpu_custom_call.1} parent=56 // pred_fallthru
          _
      $region57: #{tpu_custom_call.1} parent=5 // pred_fallthru
        _
    $region6: #{tpu_custom_call.1} parent=1 // loop_footer
      %s22 = sadd.s32 1, %s18
    $region7: #{tpu_custom_call.1} parent=1 // loop_footer_branch
      %17 = sbr.rel target = $region3
    $region8: #{tpu_custom_call.1} parent=1 // loop_exit
      _
    %400 = vsyncpa [#allocation3], 1
    %s401 = scalar_lea.sflag [#allocation3], 1
    %402 = vsyncpa %s401, 1
    %403 = vsyncpa [#allocation6], 1
    %s404 = scalar_lea.sflag [#allocation6], 1
    %405 = vsyncpa %s404, 1
    %406 = vsyncpa [#allocation4], 1
    %s407 = scalar_lea.sflag [#allocation4], 1
    %408 = vsyncpa %s407, 1

</llo_original>
